<compile_context>
chip_gen: v6e
topology: v6e:2x2x1
jax: 0.10.0
libtpu: 0.0.40
codegen_flags: <defaults>
</compile_context>

<pallas_src>
import functools

import jax
import jax.numpy as jnp
from jax.experimental import pallas as pl
from jax.experimental.pallas import tpu as pltpu


def _temporal_edge_kernel(x_ref, w_ref, b_ref, o_ref, *, d, feat):
    # x_ref : (TN, F)            input edge-feature tile (input dtype)
    # w_ref : (1, D)   f32       Time2Vec frequencies (index 0 = linear term)
    # b_ref : (1, D)   f32       Time2Vec phases
    # o_ref : (TN, D + F - 1)    output tile (input dtype)
    x = x_ref[...]                                    # (TN, F)
    t = x[:, 0:1].astype(jnp.float32)                 # (TN, 1) time feature, f32
    tv = t * w_ref[...] + b_ref[...]                  # (TN, D) f32, lane broadcast

    # Linear term (index 0) and periodic terms (indices 1..D-1) are written
    # straight into their lane slices -- no iota/where select, no concat.
    o_ref[:, 0:1] = tv[:, 0:1].astype(o_ref.dtype)
    if d > 1:
        o_ref[:, 1:d] = jnp.sin(tv[:, 1:d]).astype(o_ref.dtype)
    if feat > 1:
        o_ref[:, d:] = x[:, 1:]


def _round_up(v, m):
    return ((v + m - 1) // m) * m


def _pad128(v):
    return _round_up(int(v), 128)


def _vmem_capacity_bytes():
    try:
        cap = getattr(pltpu.get_tpu_info(), "vmem_capacity_bytes", None)
        if cap:
            return int(cap)
    except Exception:
        pass
    return 64 * 1024 * 1024  # conservative default (v7x per-TensorCore VMEM)


def temporal_edge_encoder(x, w, b, *, row_tile=None):
    """x: (..., F).  w, b: (D,) Time2Vec params.  Returns (..., D + F - 1)."""
    orig_shape = x.shape
    feat = int(orig_shape[-1])
    d = int(w.shape[0])
    out_feat = d + feat - 1

    n = 1
    for s in orig_shape[:-1]:
        n *= int(s)

    x2 = x.reshape(n, feat)
    # Time2Vec params kept in f32; affine + sin computed in f32, cast on store.
    w2 = w.reshape(1, d).astype(jnp.float32)
    b2 = b.reshape(1, d).astype(jnp.float32)

    itemsize = jnp.dtype(x2.dtype).itemsize
    # Sublane multiple: 8 for f32, 16 for bf16, 32 for int8.
    sub = 8 * max(1, 4 // itemsize)

    # Per-row VMEM bytes of one (input + output) block pair, 128-lane padded.
    row_bytes = (_pad128(feat) + _pad128(out_feat)) * itemsize
    vmem_cap = _vmem_capacity_bytes()
    # Per-generation budget for the double-buffered in/out streams.
    budget = min(24 * 1024 * 1024, vmem_cap // 4)
    rt_cap = max(sub, (budget // (2 * row_bytes)) // sub * sub)

    rt = rt_cap if row_tile is None else _round_up(int(row_tile), sub)
    rt = max(sub, min(rt, rt_cap, _round_up(n, sub)))

    grid_n = pl.cdiv(n, rt)

    # Real double-buffered footprint (in + out streams + resident w/b blocks).
    footprint = 2 * rt * row_bytes + 4 * 8 * 128 * 4
    vmem_limit = int(min(vmem_cap, footprint + (4 << 20)))

    # Lane-padded (tiled-HBM) traffic, not the logical element count.
    cost = pl.CostEstimate(
        flops=2 * n * d,                     # t*w + b
        transcendentals=n * max(d - 1, 0),   # sin on the periodic terms
        bytes_accessed=grid_n * rt * row_bytes + 2 * 8 * 128 * 4,
    )

    kernel = functools.partial(_temporal_edge_kernel, d=d, feat=feat)

    out2 = pl.pallas_call(
        kernel,
        out_shape=jax.ShapeDtypeStruct((n, out_feat), x.dtype),
        grid_spec=pl.GridSpec(
            grid=(grid_n,),
            in_specs=[
                pl.BlockSpec((rt, feat), lambda i: (i, 0)),
                pl.BlockSpec((1, d), lambda i: (0, 0)),
                pl.BlockSpec((1, d), lambda i: (0, 0)),
            ],
            out_specs=pl.BlockSpec((rt, out_feat), lambda i: (i, 0)),
        ),
        compiler_params=pltpu.CompilerParams(
            dimension_semantics=("parallel",),
            vmem_limit_bytes=vmem_limit,
        ),
        cost_estimate=cost,
    )(x2, w2, b2)

    return out2.reshape(*orig_shape[:-1], out_feat)


def _reference(x, w, b):
    xf = x.astype(jnp.float32)
    t = xf[..., 0:1]
    tv = t * w.astype(jnp.float32) + b.astype(jnp.float32)
    tv = jnp.concatenate([tv[..., 0:1], jnp.sin(tv[..., 1:])], axis=-1)
    return jnp.concatenate([tv.astype(x.dtype), x[..., 1:]], axis=-1)


def _make_time2vec_params(time_vec_size, freq_init_const):
    # Deterministic synthetic init (Time2Vec: one linear + D-1 periodic units).
    k = jnp.arange(time_vec_size, dtype=jnp.float32)
    denom = max(time_vec_size - 1, 1)
    w = jnp.where(k == 0, 1.0, 1.0 / (freq_init_const ** (k / denom)))
    b = jnp.zeros((time_vec_size,), dtype=jnp.float32)
    return w, b


if __name__ == "__main__":
    key = jax.random.PRNGKey(0)

    # Small shapes: batch=2, num_edges(seq)=8, edge features=16.
    batch, seq, feat = 2, 8, 16
    time_vec_size = 8
    freq_init_const = 100.0

    x = jax.random.normal(key, (batch, seq, feat), dtype=jnp.float32)
    w, b = _make_time2vec_params(time_vec_size, freq_init_const)

    out = jax.block_until_ready(temporal_edge_encoder(x, w, b))
    ref = _reference(x, w, b)
    assert out.shape == (batch, seq, time_vec_size + feat - 1), out.shape
    assert jnp.allclose(out, ref, atol=1e-4, rtol=1e-4), float(
        jnp.max(jnp.abs(out - ref))
    )

    # Exercise the non-divisible grid path (edge-block masking): N = 300 rows.
    x_odd = jax.random.normal(jax.random.PRNGKey(1), (3, 100, feat), dtype=jnp.float32)
    out_odd = jax.block_until_ready(temporal_edge_encoder(x_odd, w, b, row_tile=64))
    ref_odd = _reference(x_odd, w, b)
    assert out_odd.shape == (3, 100, time_vec_size + feat - 1), out_odd.shape
    assert jnp.allclose(out_odd, ref_odd, atol=1e-4, rtol=1e-4), float(
        jnp.max(jnp.abs(out_odd - ref_odd))
    )

    # bf16 input: Time2Vec affine + sin stay in f32 inside the kernel.
    x_bf16 = jax.random.normal(
        jax.random.PRNGKey(2), (batch, seq, feat), dtype=jnp.bfloat16
    )
    out_bf16 = jax.block_until_ready(temporal_edge_encoder(x_bf16, w, b))
    ref_bf16 = _reference(x_bf16, w, b)
    assert out_bf16.dtype == jnp.bfloat16, out_bf16.dtype
    assert jnp.allclose(
        out_bf16.astype(jnp.float32), ref_bf16.astype(jnp.float32),
        atol=5e-2, rtol=5e-2,
    ), float(jnp.max(jnp.abs(out_bf16.astype(jnp.float32) - ref_bf16.astype(jnp.float32))))

    print("KERNEL_OK")
</pallas_src>

<mosaic_0001>
module attributes {stable_mosaic.version = 11 : i64} {
  func.func @_temporal_edge_kernel(%arg0: i32, %arg1: memref<16x16xf32, #tpu.memory_space<vmem>>, %arg2: memref<1x8xf32, #tpu.memory_space<vmem>>, %arg3: memref<1x8xf32, #tpu.memory_space<vmem>>, %arg4: memref<16x23xf32, #tpu.memory_space<vmem>>) attributes {dimension_semantics = [#tpu.dimension_semantics<parallel>], iteration_bounds = array<i64: 1>, scalar_prefetch = 0 : i64, scratch_operands = 0 : i64, tpu.core_type = #tpu.core_type<tc>, window_params = [{transform_indices = @transform_0, window_bounds = array<i64: 16, 16>}, {pipeline_mode = #tpu.pipeline_mode<synchronous>, transform_indices = @transform_1, window_bounds = array<i64: 1, 8>}, {pipeline_mode = #tpu.pipeline_mode<synchronous>, transform_indices = @transform_2, window_bounds = array<i64: 1, 8>}, {transform_indices = @transform_3, window_bounds = array<i64: 16, 23>}]} {
    %c0 = arith.constant 0 : index
    %c0_0 = arith.constant 0 : index
    %0 = vector.load %arg1[%c0, %c0_0] : memref<16x16xf32, #tpu.memory_space<vmem>>, vector<16x16xf32>
    %1 = vector.extract_strided_slice %0 {offsets = [0, 0], sizes = [16, 1], strides = [1, 1]} : vector<16x16xf32> to vector<16x1xf32>
    %c0_1 = arith.constant 0 : index
    %c0_2 = arith.constant 0 : index
    %2 = vector.load %arg2[%c0_1, %c0_2] : memref<1x8xf32, #tpu.memory_space<vmem>>, vector<1x8xf32>
    %3 = vector.broadcast %1 : vector<16x1xf32> to vector<16x8xf32>
    %4 = vector.broadcast %2 : vector<1x8xf32> to vector<16x8xf32>
    %5 = arith.mulf %3, %4 : vector<16x8xf32>
    %c0_3 = arith.constant 0 : index
    %c0_4 = arith.constant 0 : index
    %6 = vector.load %arg3[%c0_3, %c0_4] : memref<1x8xf32, #tpu.memory_space<vmem>>, vector<1x8xf32>
    %7 = vector.broadcast %6 : vector<1x8xf32> to vector<16x8xf32>
    %8 = arith.addf %5, %7 : vector<16x8xf32>
    %9 = vector.extract_strided_slice %8 {offsets = [0, 0], sizes = [16, 1], strides = [1, 1]} : vector<16x8xf32> to vector<16x1xf32>
    %c0_5 = arith.constant 0 : index
    %c0_6 = arith.constant 0 : index
    %10 = vector.load %arg4[%c0_5, %c0_6] : memref<16x23xf32, #tpu.memory_space<vmem>>, vector<16x1xf32>
    tpu.vector_store %arg4[%c0_5, %c0_6], %9 {strides = array<i32>} : memref<16x23xf32, #tpu.memory_space<vmem>>, vector<16x1xf32>,
    %11 = vector.extract_strided_slice %8 {offsets = [0, 1], sizes = [16, 7], strides = [1, 1]} : vector<16x8xf32> to vector<16x7xf32>
    %12 = math.sin %11 : vector<16x7xf32>
    %c0_7 = arith.constant 0 : index
    %c1 = arith.constant 1 : index
    %13 = vector.load %arg4[%c0_7, %c1] : memref<16x23xf32, #tpu.memory_space<vmem>>, vector<16x7xf32>
    tpu.vector_store %arg4[%c0_7, %c1], %12 {strides = array<i32>} : memref<16x23xf32, #tpu.memory_space<vmem>>, vector<16x7xf32>,
    %14 = vector.extract_strided_slice %0 {offsets = [0, 1], sizes = [16, 15], strides = [1, 1]} : vector<16x16xf32> to vector<16x15xf32>
    %c0_8 = arith.constant 0 : index
    %c8 = arith.constant 8 : index
    %15 = vector.load %arg4[%c0_8, %c8] : memref<16x23xf32, #tpu.memory_space<vmem>>, vector<16x15xf32>
    tpu.vector_store %arg4[%c0_8, %c8], %14 {strides = array<i32>} : memref<16x23xf32, #tpu.memory_space<vmem>>, vector<16x15xf32>,
    return
  }
  func.func @transform_0(%arg0: i32) -> (i32, i32) {
    %c0_i32 = arith.constant 0 : i32
    %c0_i32_0 = arith.constant 0 : i32
    return %arg0, %c0_i32 : i32, i32
  }
  func.func @transform_1(%arg0: i32) -> (i32, i32) {
    %c0_i32 = arith.constant 0 : i32
    %c0_i32_0 = arith.constant 0 : i32
    %c0_i32_1 = arith.constant 0 : i32
    return %c0_i32, %c0_i32_0 : i32, i32
  }
  func.func @transform_2(%arg0: i32) -> (i32, i32) {
    %c0_i32 = arith.constant 0 : i32
    %c0_i32_0 = arith.constant 0 : i32
    %c0_i32_1 = arith.constant 0 : i32
    return %c0_i32, %c0_i32_0 : i32, i32
  }
  func.func @transform_3(%arg0: i32) -> (i32, i32) {
    %c0_i32 = arith.constant 0 : i32
    %c0_i32_0 = arith.constant 0 : i32
    return %arg0, %c0_i32 : i32, i32
  }
}

</mosaic_0001>

<llo_original>
// kernel: tpu_custom_call.1
$region0: #{tpu_custom_call.1}
  #allocation0 [shape = 'u32[]', space=smem, size = 0x4, offset = 0x4, fixed_abs, tag = 'smem constant byte address 0x4 - core index']
  #allocation1 [shape = 'u32[144,128]{1,0:T(1,128)}', space=vmem, size = 0x12000, scoped, tag = 'internal scratch']
  %s0 = inlined_call_operand.hbm [shape: f32[16,16], index: 0, kind: input, shape index: {}]
  %s1 = inlined_call_operand.vmem [shape: f32[1,8], index: 1, kind: input, shape index: {}]
  %s2 = inlined_call_operand.vmem [shape: f32[1,8], index: 2, kind: input, shape index: {}]
  %s3 = inlined_call_operand.hbm [shape: f32[16,23], index: 3, kind: output, shape index: {}]
  %s4 = sld [smem:[#allocation0]]
  $region26: #{tpu_custom_call.1} parent=0
    _
  %s6 = ssub.s32 1, %s4
  %s7 = scalar_select 0, %s6, %s4
  $region1: #{tpu_custom_call.1} parent=0
    #allocation2 [shape = 'u8[8192]{0}', space=vmem, size = 0x2000, scoped, tag = 'input window, operand 0, single buffered']
    #allocation3 [shape = 's32[1]{0}', space=sflag, size = 0x4, scoped, tag = 'scoped memory for tpu_custom_call.1']
    #allocation4 [shape = 's32[1]{0}', space=sflag, size = 0x4, scoped, tag = 'scoped memory for tpu_custom_call.1']
    #allocation5 [shape = 'u8[8192]{0}', space=vmem, size = 0x2000, scoped, tag = 'output window, operand 0, single buffered']
    %8 = vsyncpa [#allocation3], 0
    %9 = vsyncpa [#allocation4], 0
    // Predicated region
    $region2: #{tpu_custom_call.1} parent=1 // pred_check
      _
    $region3: #{tpu_custom_call.1} parent=1 // pred_check_branch
      %11 = sbr.rel (0) target = $region5
    $region4: #{tpu_custom_call.1} parent=1 // pred_region
      %s13 = ssub.s32 256, 256
      %14 = vsyncadd [#allocation3], %s13
      %s15 = sshll.u32 [#allocation2], 4
      %s16 = int_to_ptr.vmem [resolvable:$true] %s15
      %21 = dma.hbm_to_vmem [thread:$0]  %s0, 256, %s16, [#allocation3], 128, 128, 8
    $region5: #{tpu_custom_call.1} parent=1 // pred_fallthru
      _
    // Predicated region
    $region6: #{tpu_custom_call.1} parent=1 // pred_check
      _
    $region7: #{tpu_custom_call.1} parent=1 // pred_check_branch
      %23 = sbr.rel (0) target = $region9
    $region8: #{tpu_custom_call.1} parent=1 // pred_region
      _
    $region9: #{tpu_custom_call.1} parent=1 // pred_fallthru
      _
    // Predicated region
    $region10: #{tpu_custom_call.1} parent=1 // pred_check
      _
    $region11: #{tpu_custom_call.1} parent=1 // pred_check_branch
      %25 = sbr.rel (0) target = $region13
    $region12: #{tpu_custom_call.1} parent=1 // pred_region
      _
    $region13: #{tpu_custom_call.1} parent=1 // pred_fallthru
      _
    // Predicated region
    $region14: #{tpu_custom_call.1} parent=1 // pred_check
      _
    $region15: #{tpu_custom_call.1} parent=1 // pred_check_branch
      %27 = sbr.rel (0) target = $region17
    $region16: #{tpu_custom_call.1} parent=1 // pred_region
      %28 = dma.done [#allocation3], 256
    $region17: #{tpu_custom_call.1} parent=1 // pred_fallthru
      _
    %v29 = vld [vmem:[#allocation2] sm:$0xff]
    %v30 = vld [vmem:[#allocation2 + $0x8] sm:$0xff]
    %v31 = vld [vmem:[%s1] sm:$0x1]
    %33 = vset.pattern.permute.xlu0 0
    %34 = vperm.xlu0 %33, %v29
    %v35 = vpop.permute.xlu0 %34
    %38 = vset.pattern.permute.xlu0 0
    %39 = vperm.xlu0 %38, %v30
    %v40 = vpop.permute.xlu0 %39
    %v43 = vlaneseq
    %v44 = vshrl.u32 %v43, 7
    %v45 = vsub.s32 0, %v44
    %v46 = vrot.slane %v31, %v45
    %v48 = vmul.f32 %v35, %v46
    %v49 = vmul.f32 %v40, %v46
    %v50 = vld [vmem:[%s2] sm:$0x1]
    %v52 = vlaneseq
    %v53 = vshrl.u32 %v52, 7
    %v54 = vsub.s32 0, %v53
    %v55 = vrot.slane %v50, %v54
    %v57 = vadd.f32 %v48, %v55
    %v58 = vadd.f32 %v49, %v55
    %vm59 = vcmask 7168
    %60 = vst.msk [vmem:[#allocation5] sm:$0xff] %vm59, %v57
    %61 = vst.msk [vmem:[#allocation5 + $0x8] sm:$0xff] %vm59, %v58
    %v62 = vand.u32 2147483647, %v57
    %vm63 = vcmp.le.f32.partialorder %v62, 0.7853982
    %vm64 = vcmp.lt.s32.totalorder %v57, 0
    %v65 = vand.u32 %v57, 2139095040
    %v66 = vshrl.u32 %v65, 23
    %v67 = vsub.s32 %v66, 127
    %v68 = vand.u32 2147483647, %v57
    %v69 = vand.u32 %v68, 8388607
    %v70 = vor.u32 %v69, 8388608
    %v71 = vsub.s32 0, %v70
    %v72 = vadd.s32 %v67, 1
    %vm73 = vcmp.gt.s32.totalorder %v72, 0
    %v74 = vsel %vm73, %v72, 0
    %v75 = vshrl.u32 %v74, 5
    %v76 = vand.u32 %v74, 31
    %v77 = vsub.s32 32, %v76
    %v78 = vshrl.u32 683565275, %v77
    %v79 = vshll.u32 683565275, %v76
    %v80 = vshrl.u32 2475754826, %v77
    %v81 = vor.u32 %v79, %v80
    %v82 = vshll.u32 2475754826, %v76
    %v83 = vshrl.u32 2131351028, %v77
    %v84 = vor.u32 %v82, %v83
    %v85 = vshll.u32 2131351028, %v76
    %v86 = vshrl.u32 2102212464, %v77
    %v87 = vor.u32 %v85, %v86
    %v88 = vshll.u32 2102212464, %v76
    %v89 = vshrl.u32 920167782, %v77
    %v90 = vor.u32 %v88, %v89
    %v91 = vshll.u32 920167782, %v76
    %v92 = vshrl.u32 1326507024, %v77
    %v93 = vor.u32 %v91, %v92
    %vm94 = vcmp.lt.s32.totalorder %v75, 1
    %vm95 = vcmp.lt.s32.totalorder %v75, 2
    %vm96 = vcmp.lt.s32.totalorder %v75, 3
    %vm97 = vcmp.lt.s32.totalorder %v75, 4
    %v98 = vsel %vm94, %v78, %v81
    %v99 = vsel %vm97, %v87, 2102212464
    %v100 = vsel %vm96, %v84, %v99
    %v101 = vsel %vm95, %v98, %v100
    %v102 = vsel %vm94, %v81, %v84
    %v103 = vsel %vm97, %v90, 920167782
    %v104 = vsel %vm96, %v87, %v103
    %v105 = vsel %vm95, %v102, %v104
    %v106 = vsel %vm94, %v84, %v87
    %v107 = vsel %vm97, %v93, 1326507024
    %v108 = vsel %vm96, %v90, %v107
    %v109 = vsel %vm95, %v106, %v108
    %v110 = vshll.u32 %v70, 8
    %v111 = vmul.u32.u64.compose %v110, %v109
    %v112 = vextract.low.u32 %v111
    %v113 = vextract.high.u32 %v111
    %v114 = vmul.u32.u64.compose %v110, %v105
    %v115 = vextract.low.u32 %v114
    %v116 = vextract.high.u32 %v114
    %v117 = vmul.u32 %v110, %v101
    %v118 = vadd.s32 %v113, %v115
    %vm119 = vc.u32 %v113, %v115
    %v120 = vadd.s32 %v116, 1
    %v121 = vsel %vm119, %v120, %v116
    %v122 = vadd.s32 %v117, %v121
    %v123 = vadd.s32 %v122, 536870912
    %v124 = vshrl.u32 %v123, 30
    %v125 = vshll.u32 %v124, 30
    %v126 = vsub.s32 %v122, %v125
    %vm127 = vcmp.lt.s32.totalorder %v126, 0
    %v128 = vsub.s32 0, %v126
    %v129 = vsel %vm127, %v128, %v126
    %v130 = vclz %v129
    %v131 = vsub.s32 %v130, 2
    %vm132 = vcmp.gt.s32.totalorder 0, %v131
    %v133 = vsel %vm132, 0, %v131
    %v134 = vsub.s32 32, %v133
    %v135 = vshll.u32 %v126, %v133
    %v136 = vshrl.u32 %v118, %v134
    %v137 = vor.u32 %v135, %v136
    %v138 = vsub.s32 4294967266, %v133
    %v139 = vadd.s32 %v138, 127
    %v140 = vshll.u32 %v139, 23
    %v141 = vor.u32 4788187, %v140
    %v142 = vand.u32 2147483647, %v141
    %v144 = vcvt.s32.f32 %v137
    %v145 = vmul.f32 %v144, %v142
    %v146 = vxor.u32 %v145, 2147483648
    %v147 = vsel %vm64, %v146, %v145
    %v148 = vsub.s32 4, %v124
    %v149 = vsel %vm64, %v148, %v124
    %v150 = vsel %vm63, %v57, %v147
    %v151 = vsel %vm63, 0, %v149
    %v152 = vcosq.f32.pop %v150
    %v153 = vsinq.f32.pop %v150
    %vm154 = vweird.f32 %v57
    %v155 = vadd.s32 %v151, 3
    %v156 = vand.u32 %v155, 3
    %vm157 = vcmp.lt.s32.totalorder %v156, 2
    %vm158 = vcmp.eq.s32.totalorder %v156, 0
    %v159 = vxor.u32 %v153, 2147483648
    %v160 = vsel %vm158, %v152, %v159
    %vm161 = vcmp.eq.s32.totalorder %v156, 2
    %v162 = vxor.u32 %v152, 2147483648
    %v163 = vsel %vm161, %v162, %v153
    %v164 = vsel %vm157, %v160, %v163
    %v165 = vsel %vm154, nan, %v164
    %v166 = vand.u32 2147483647, %v58
    %vm167 = vcmp.le.f32.partialorder %v166, 0.7853982
    %vm168 = vcmp.lt.s32.totalorder %v58, 0
    %v169 = vand.u32 %v58, 2139095040
    %v170 = vshrl.u32 %v169, 23
    %v171 = vsub.s32 %v170, 127
    %v172 = vand.u32 2147483647, %v58
    %v173 = vand.u32 %v172, 8388607
    %v174 = vor.u32 %v173, 8388608
    %v175 = vsub.s32 0, %v174
    %v176 = vadd.s32 %v171, 1
    %vm177 = vcmp.gt.s32.totalorder %v176, 0
    %v178 = vsel %vm177, %v176, 0
    %v179 = vshrl.u32 %v178, 5
    %v180 = vand.u32 %v178, 31
    %v181 = vsub.s32 32, %v180
    %v182 = vshrl.u32 683565275, %v181
    %v183 = vshll.u32 683565275, %v180
    %v184 = vshrl.u32 2475754826, %v181
    %v185 = vor.u32 %v183, %v184
    %v186 = vshll.u32 2475754826, %v180
    %v187 = vshrl.u32 2131351028, %v181
    %v188 = vor.u32 %v186, %v187
    %v189 = vshll.u32 2131351028, %v180
    %v190 = vshrl.u32 2102212464, %v181
    %v191 = vor.u32 %v189, %v190
    %v192 = vshll.u32 2102212464, %v180
    %v193 = vshrl.u32 920167782, %v181
    %v194 = vor.u32 %v192, %v193
    %v195 = vshll.u32 920167782, %v180
    %v196 = vshrl.u32 1326507024, %v181
    %v197 = vor.u32 %v195, %v196
    %vm198 = vcmp.lt.s32.totalorder %v179, 1
    %vm199 = vcmp.lt.s32.totalorder %v179, 2
    %vm200 = vcmp.lt.s32.totalorder %v179, 3
    %vm201 = vcmp.lt.s32.totalorder %v179, 4
    %v202 = vsel %vm198, %v182, %v185
    %v203 = vsel %vm201, %v191, 2102212464
    %v204 = vsel %vm200, %v188, %v203
    %v205 = vsel %vm199, %v202, %v204
    %v206 = vsel %vm198, %v185, %v188
    %v207 = vsel %vm201, %v194, 920167782
    %v208 = vsel %vm200, %v191, %v207
    %v209 = vsel %vm199, %v206, %v208
    %v210 = vsel %vm198, %v188, %v191
    %v211 = vsel %vm201, %v197, 1326507024
    %v212 = vsel %vm200, %v194, %v211
    %v213 = vsel %vm199, %v210, %v212
    %v214 = vshll.u32 %v174, 8
    %v215 = vmul.u32.u64.compose %v214, %v213
    %v216 = vextract.low.u32 %v215
    %v217 = vextract.high.u32 %v215
    %v218 = vmul.u32.u64.compose %v214, %v209
    %v219 = vextract.low.u32 %v218
    %v220 = vextract.high.u32 %v218
    %v221 = vmul.u32 %v214, %v205
    %v222 = vadd.s32 %v217, %v219
    %vm223 = vc.u32 %v217, %v219
    %v224 = vadd.s32 %v220, 1
    %v225 = vsel %vm223, %v224, %v220
    %v226 = vadd.s32 %v221, %v225
    %v227 = vadd.s32 %v226, 536870912
    %v228 = vshrl.u32 %v227, 30
    %v229 = vshll.u32 %v228, 30
    %v230 = vsub.s32 %v226, %v229
    %vm231 = vcmp.lt.s32.totalorder %v230, 0
    %v232 = vsub.s32 0, %v230
    %v233 = vsel %vm231, %v232, %v230
    %v234 = vclz %v233
    %v235 = vsub.s32 %v234, 2
    %vm236 = vcmp.gt.s32.totalorder 0, %v235
    %v237 = vsel %vm236, 0, %v235
    %v238 = vsub.s32 32, %v237
    %v239 = vshll.u32 %v230, %v237
    %v240 = vshrl.u32 %v222, %v238
    %v241 = vor.u32 %v239, %v240
    %v242 = vsub.s32 4294967266, %v237
    %v243 = vadd.s32 %v242, 127
    %v244 = vshll.u32 %v243, 23
    %v245 = vor.u32 4788187, %v244
    %v246 = vand.u32 2147483647, %v245
    %v248 = vcvt.s32.f32 %v241
    %v249 = vmul.f32 %v248, %v246
    %v250 = vxor.u32 %v249, 2147483648
    %v251 = vsel %vm168, %v250, %v249
    %v252 = vsub.s32 4, %v228
    %v253 = vsel %vm168, %v252, %v228
    %v254 = vsel %vm167, %v58, %v251
    %v255 = vsel %vm167, 0, %v253
    %v256 = vcosq.f32.pop %v254
    %v257 = vsinq.f32.pop %v254
    %vm258 = vweird.f32 %v58
    %v259 = vadd.s32 %v255, 3
    %v260 = vand.u32 %v259, 3
    %vm261 = vcmp.lt.s32.totalorder %v260, 2
    %vm262 = vcmp.eq.s32.totalorder %v260, 0
    %v263 = vxor.u32 %v257, 2147483648
    %v264 = vsel %vm262, %v256, %v263
    %vm265 = vcmp.eq.s32.totalorder %v260, 2
    %v266 = vxor.u32 %v256, 2147483648
    %v267 = vsel %vm265, %v266, %v257
    %v268 = vsel %vm261, %v264, %v267
    %v269 = vsel %vm258, nan, %v268
    %vm270 = vcmask 64520
    %271 = vst.msk [vmem:[#allocation5] sm:$0xff] %vm270, %v165
    %272 = vst.msk [vmem:[#allocation5 + $0x8] sm:$0xff] %vm270, %v269
    %273 = vrot.lane.b32.xlu0 %v29, 7
    %v274 = vpop.permute.xlu0 %273
    %275 = vrot.lane.b32.xlu0 %v30, 7
    %v276 = vpop.permute.xlu0 %275
    %vm279 = vcmask 187456
    %280 = vst.msk [vmem:[#allocation5] sm:$0xff] %vm279, %v274
    %281 = vst.msk [vmem:[#allocation5 + $0x8] sm:$0xff] %vm279, %v276
    // Predicated region
    $region18: #{tpu_custom_call.1} parent=1 // pred_check
      _
    $region19: #{tpu_custom_call.1} parent=1 // pred_check_branch
      %283 = sbr.rel (0) target = $region21
    $region20: #{tpu_custom_call.1} parent=1 // pred_region
      %s285 = ssub.s32 256, 256
      %286 = vsyncadd [#allocation4], %s285
      %s287 = sshll.u32 [#allocation5], 4
      %s288 = int_to_ptr.vmem [resolvable:$true] %s287
      %293 = dma.vmem_to_hbm [thread:$0]  %s288, 256, %s3, [#allocation4], 128, 128, 8
    $region21: #{tpu_custom_call.1} parent=1 // pred_fallthru
      _
    // Predicated region
    $region22: #{tpu_custom_call.1} parent=1 // pred_check
      _
    $region23: #{tpu_custom_call.1} parent=1 // pred_check_branch
      %295 = sbr.rel (0) target = $region25
    $region24: #{tpu_custom_call.1} parent=1 // pred_region
      %296 = dma.done [#allocation4], 256
    $region25: #{tpu_custom_call.1} parent=1 // pred_fallthru
      _
    %297 = vsyncpa [#allocation3], 1
    %298 = vsyncpa [#allocation4], 1

</llo_original>
